<compile_context>
chip_gen: v6e
topology: v6e:2x2x1
jax: 0.10.0
libtpu: 0.0.40
codegen_flags: <defaults>
</compile_context>

<pallas_src>
import functools

import jax
import jax.numpy as jnp
from jax import lax
from jax.experimental import pallas as pl
from jax.experimental.pallas import tpu as pltpu


LANES = 128
MAX_TILE_ROWS = 512  # 1 MiB per-input block; x4 inputs x2 buffers ~= 8 MiB VMEM


def _cdiv(a, b):
    return -(-a // b)


def _round_up(x, m):
    return ((x + m - 1) // m) * m


def _smooth_l1_sum_kernel(*refs, beta, n_valid, r_tile, tiles_per_split,
                          mask_tail, has_weight):
    if has_weight:
        pred_ref, target_ref, anchor_ref, weight_ref, out_ref, acc_ref = refs
    else:
        pred_ref, target_ref, anchor_ref, out_ref, acc_ref = refs
        weight_ref = None

    i = pl.program_id(1)  # reduction axis within this split

    @pl.when(i == 0)
    def _():
        acc_ref[...] = jnp.zeros_like(acc_ref)

    # Dense per-coordinate [r_tile, 128] slabs (no sublane concat/shuffles).
    ax1, ay1, ax2, ay2 = anchor_ref[0], anchor_ref[1], anchor_ref[2], anchor_ref[3]
    tx1, ty1, tx2, ty2 = target_ref[0], target_ref[1], target_ref[2], target_ref[3]

    # xyxy -> center-size for the anchor, and the target in center-size form.
    aw = ax2 - ax1
    ah = ay2 - ay1
    acx = ax1 + 0.5 * aw
    acy = ay1 + 0.5 * ah
    tw = tx2 - tx1
    th = ty2 - ty1
    tcx = tx1 + 0.5 * tw
    tcy = ty1 + 0.5 * th

    # encode(target, anchor, variances=[1,1,1,1])
    inv_aw = 1.0 / aw
    inv_ah = 1.0 / ah
    gdx = (tcx - acx) * inv_aw
    gdy = (tcy - acy) * inv_ah
    gdw = jnp.log(tw * inv_aw)
    gdh = jnp.log(th * inv_ah)

    half_beta = 0.5 * beta
    inv_two_beta = 0.5 / beta

    def huber(p, g):
        d = jnp.abs(p - g)
        return jnp.where(d < beta, inv_two_beta * d * d, d - half_beta)

    lx = huber(pred_ref[0], gdx)
    ly = huber(pred_ref[1], gdy)
    lw = huber(pred_ref[2], gdw)
    lh = huber(pred_ref[3], gdh)

    if has_weight:
        lx = lx * weight_ref[0]
        ly = ly * weight_ref[1]
        lw = lw * weight_ref[2]
        lh = lh * weight_ref[3]

    tile_loss = (lx + ly) + (lw + lh)

    if mask_tail:
        # Mask padded boxes (zero-padded inputs -> NaN/inf intermediates, but
        # jnp.where selects, so they never reach the accumulator).
        c = pl.program_id(0)
        row = lax.broadcasted_iota(jnp.int32, (r_tile, LANES), 0)
        lane = lax.broadcasted_iota(jnp.int32, (r_tile, LANES), 1)
        box = ((c * tiles_per_split + i) * r_tile + row) * LANES + lane
        tile_loss = jnp.where(box < n_valid, tile_loss, 0.0)

    acc_ref[...] += tile_loss

    @pl.when(i == pl.num_programs(1) - 1)
    def _():
        # Single cross-lane/sublane reduce per split, amortized over all tiles.
        out_ref[0, 0] = jnp.sum(acc_ref[...])


def smooth_l1_loss(pred, target, anchor, weight=None, *,
                   beta=1.0, reduction='mean', loss_weight=1.0,
                   avg_factor=None):
    """Forward pass of SmoothL1Loss. pred/target/anchor: [N, 4] f32."""
    assert beta > 0, "beta must be > 0"
    assert pred.shape == target.shape == anchor.shape
    assert pred.ndim == 2 and pred.shape[1] == 4
    n = pred.shape[0]

    # --- tiling geometry -----------------------------------------------------
    n_rows = max(1, _cdiv(n, LANES))                    # rows of 128 boxes
    # Split over (up to) two TensorCores when there is enough work (v7x
    # megacore); on 1-TC chips the 'parallel' axis just runs sequentially.
    num_splits = 2 if n_rows > MAX_TILE_ROWS else 1
    tiles_per_split = _cdiv(_cdiv(n_rows, num_splits), MAX_TILE_ROWS)
    r_tile = _round_up(_cdiv(n_rows, num_splits * tiles_per_split), 8)
    n_rows_pad = num_splits * tiles_per_split * r_tile
    n_pad = n_rows_pad * LANES

    # --- repack [N,4] row-major -> [4, n_rows_pad, 128] coordinate slabs ------
    # TODO(synk): storing boxes coordinate-major upstream would remove this
    # extra (fused pad+transpose+reshape) HBM pass entirely.
    def to_slabs(x):
        x = jnp.asarray(x, jnp.float32)
        if n_pad != n:
            x = jnp.pad(x, ((0, n_pad - n), (0, 0)))
        return x.T.reshape(4, n_rows_pad, LANES)

    inputs = [to_slabs(pred), to_slabs(target), to_slabs(anchor)]
    has_weight = weight is not None
    if has_weight:
        w = jnp.asarray(weight, jnp.float32)
        if w.ndim == 1:
            w = jnp.broadcast_to(w[:, None], (n, 4))
        inputs.append(to_slabs(w))

    # --- pallas call -----------------------------------------------------------
    kern = functools.partial(
        _smooth_l1_sum_kernel, beta=float(beta), n_valid=n,
        r_tile=r_tile, tiles_per_split=tiles_per_split,
        mask_tail=(n_pad != n), has_weight=has_weight)

    in_spec = pl.BlockSpec((4, r_tile, LANES),
                           lambda c, i: (0, c * tiles_per_split + i, 0))
    grid_spec = pltpu.PrefetchScalarGridSpec(
        num_scalar_prefetch=0,
        grid=(num_splits, tiles_per_split),
        in_specs=[in_spec] * len(inputs),
        out_specs=pl.BlockSpec((1, 1), lambda c, i: (c, 0),
                               memory_space=pltpu.MemorySpace.SMEM),
        scratch_shapes=[pltpu.VMEM((r_tile, LANES), jnp.float32)],
    )

    n_in = len(inputs)
    cost = pl.CostEstimate(
        flops=48 * n_pad,
        transcendentals=2 * n_pad,
        bytes_accessed=n_in * n_pad * 4 * 4 + num_splits * 4,
    )

    partial_sums = pl.pallas_call(
        kern,
        out_shape=jax.ShapeDtypeStruct((num_splits, 1), jnp.float32),
        grid_spec=grid_spec,
        compiler_params=pltpu.CompilerParams(
            dimension_semantics=("parallel", "arbitrary")),
        cost_estimate=cost,
    )(*inputs)

    loss_sum = jnp.sum(partial_sums)

    # --- reduction -------------------------------------------------------------
    if reduction == 'mean':
        if avg_factor is None:
            loss = loss_sum / (n * 4)
        else:
            loss = loss_sum / avg_factor
    elif reduction == 'sum':
        loss = loss_sum
    else:
        # TODO(synk): reduction='none' (per-element loss output) not wired up;
        # it needs an elementwise [4, n_rows_pad, 128] VMEM output instead of
        # the scalar partial sums.
        raise NotImplementedError("reduction='none' not implemented")

    return loss_weight * loss


def _reference_elem(pred, target, anchor, beta=1.0):
    """Pure-JAX elementwise reference ([N,4] loss) for sanity checking."""
    aw = anchor[:, 2] - anchor[:, 0]
    ah = anchor[:, 3] - anchor[:, 1]
    acx = anchor[:, 0] + 0.5 * aw
    acy = anchor[:, 1] + 0.5 * ah
    tw = target[:, 2] - target[:, 0]
    th = target[:, 3] - target[:, 1]
    tcx = target[:, 0] + 0.5 * tw
    tcy = target[:, 1] + 0.5 * th
    gt = jnp.stack([(tcx - acx) / aw, (tcy - acy) / ah,
                    jnp.log(tw / aw), jnp.log(th / ah)], axis=1)
    diff = jnp.abs(pred - gt)
    return jnp.where(diff < beta, 0.5 * diff * diff / beta, diff - 0.5 * beta)


if __name__ == "__main__":
    key = jax.random.PRNGKey(0)
    k1, k2, k3, k4, k5, k6 = jax.random.split(key, 6)

    N = 50  # number of boxes (non-multiple of 128 to exercise the tail mask)

    # anchors / targets as valid xyxy boxes (x2 > x1, y2 > y1)
    a_xy = jax.random.uniform(k1, (N, 2), jnp.float32, 0.0, 10.0)
    a_wh = jax.random.uniform(k2, (N, 2), jnp.float32, 1.0, 5.0)
    anchor = jnp.concatenate([a_xy, a_xy + a_wh], axis=1)

    t_xy = jax.random.uniform(k3, (N, 2), jnp.float32, 0.0, 10.0)
    t_wh = jax.random.uniform(k4, (N, 2), jnp.float32, 1.0, 5.0)
    target = jnp.concatenate([t_xy, t_xy + t_wh], axis=1)

    pred = 0.1 * jax.random.normal(k5, (N, 4), jnp.float32)

    # unweighted / mean  (3-input kernel variant)
    loss = smooth_l1_loss(pred, target, anchor,
                          beta=1.0, reduction='mean', loss_weight=1.0)
    loss = jax.block_until_ready(loss)
    ref = _reference_elem(pred, target, anchor, beta=1.0).mean()
    assert jnp.allclose(loss, ref, rtol=1e-5, atol=1e-6), (loss, ref)

    # weighted / sum  (4-input kernel variant)
    weight = (jax.random.uniform(k6, (N, 4), jnp.float32) > 0.3).astype(jnp.float32)
    loss_w = smooth_l1_loss(pred, target, anchor, weight=weight,
                            beta=1.0, reduction='sum', loss_weight=1.0)
    loss_w = jax.block_until_ready(loss_w)
    ref_w = jnp.sum(_reference_elem(pred, target, anchor, beta=1.0) * weight)
    assert jnp.allclose(loss_w, ref_w, rtol=1e-5, atol=1e-5), (loss_w, ref_w)

    print("KERNEL_OK")
</pallas_src>

<mosaic_0001>
module attributes {stable_mosaic.version = 11 : i64} {
  func.func @_smooth_l1_sum_kernel(%arg0: i32, %arg1: i32, %arg2: memref<4x8x128xf32, #tpu.memory_space<vmem>>, %arg3: memref<4x8x128xf32, #tpu.memory_space<vmem>>, %arg4: memref<4x8x128xf32, #tpu.memory_space<vmem>>, %arg5: memref<1x1xf32, #tpu.memory_space<smem>>, %arg6: memref<8x128xf32, #tpu.memory_space<vmem>>) attributes {dimension_semantics = [#tpu.dimension_semantics<parallel>, #tpu.dimension_semantics<arbitrary>], iteration_bounds = array<i64: 1, 1>, scalar_prefetch = 0 : i64, scratch_operands = 1 : i64, tpu.core_type = #tpu.core_type<tc>, window_params = [{transform_indices = @transform_0, window_bounds = array<i64: 4, 8, 128>}, {transform_indices = @transform_1, window_bounds = array<i64: 4, 8, 128>}, {transform_indices = @transform_2, window_bounds = array<i64: 4, 8, 128>}, {transform_indices = @transform_3, window_bounds = array<i64: 1, 1>}]} {
    %c0_i32 = arith.constant 0 : i32
    %0 = arith.cmpi eq, %arg1, %c0_i32 : i32
    %1 = arith.extui %0 : i1 to i32
    %c0_i32_0 = arith.constant 0 : i32
    %2 = arith.cmpi ne, %1, %c0_i32_0 : i32
    scf.if %2 {
      %cst_57 = arith.constant 0.000000e+00 : f32
      %118 = vector.broadcast %cst_57 : f32 to vector<8x128xf32>
      %c0_58 = arith.constant 0 : index
      %c0_59 = arith.constant 0 : index
      %119 = vector.load %arg6[%c0_58, %c0_59] : memref<8x128xf32, #tpu.memory_space<vmem>>, vector<8x128xf32>
      tpu.vector_store %arg6[%c0_58, %c0_59], %118 {strides = array<i32>} : memref<8x128xf32, #tpu.memory_space<vmem>>, vector<8x128xf32>,
    } else {
    }
    %c0 = arith.constant 0 : index
    %c0_1 = arith.constant 0 : index
    %c0_2 = arith.constant 0 : index
    %3 = vector.load %arg4[%c0, %c0_1, %c0_2] : memref<4x8x128xf32, #tpu.memory_space<vmem>>, vector<1x8x128xf32>
    %4 = vector.shape_cast %3 : vector<1x8x128xf32> to vector<8x128xf32>
    %c1 = arith.constant 1 : index
    %c0_3 = arith.constant 0 : index
    %c0_4 = arith.constant 0 : index
    %5 = vector.load %arg4[%c1, %c0_3, %c0_4] : memref<4x8x128xf32, #tpu.memory_space<vmem>>, vector<1x8x128xf32>
    %6 = vector.shape_cast %5 : vector<1x8x128xf32> to vector<8x128xf32>
    %c2 = arith.constant 2 : index
    %c0_5 = arith.constant 0 : index
    %c0_6 = arith.constant 0 : index
    %7 = vector.load %arg4[%c2, %c0_5, %c0_6] : memref<4x8x128xf32, #tpu.memory_space<vmem>>, vector<1x8x128xf32>
    %8 = vector.shape_cast %7 : vector<1x8x128xf32> to vector<8x128xf32>
    %c3 = arith.constant 3 : index
    %c0_7 = arith.constant 0 : index
    %c0_8 = arith.constant 0 : index
    %9 = vector.load %arg4[%c3, %c0_7, %c0_8] : memref<4x8x128xf32, #tpu.memory_space<vmem>>, vector<1x8x128xf32>
    %10 = vector.shape_cast %9 : vector<1x8x128xf32> to vector<8x128xf32>
    %c0_9 = arith.constant 0 : index
    %c0_10 = arith.constant 0 : index
    %c0_11 = arith.constant 0 : index
    %11 = vector.load %arg3[%c0_9, %c0_10, %c0_11] : memref<4x8x128xf32, #tpu.memory_space<vmem>>, vector<1x8x128xf32>
    %12 = vector.shape_cast %11 : vector<1x8x128xf32> to vector<8x128xf32>
    %c1_12 = arith.constant 1 : index
    %c0_13 = arith.constant 0 : index
    %c0_14 = arith.constant 0 : index
    %13 = vector.load %arg3[%c1_12, %c0_13, %c0_14] : memref<4x8x128xf32, #tpu.memory_space<vmem>>, vector<1x8x128xf32>
    %14 = vector.shape_cast %13 : vector<1x8x128xf32> to vector<8x128xf32>
    %c2_15 = arith.constant 2 : index
    %c0_16 = arith.constant 0 : index
    %c0_17 = arith.constant 0 : index
    %15 = vector.load %arg3[%c2_15, %c0_16, %c0_17] : memref<4x8x128xf32, #tpu.memory_space<vmem>>, vector<1x8x128xf32>
    %16 = vector.shape_cast %15 : vector<1x8x128xf32> to vector<8x128xf32>
    %c3_18 = arith.constant 3 : index
    %c0_19 = arith.constant 0 : index
    %c0_20 = arith.constant 0 : index
    %17 = vector.load %arg3[%c3_18, %c0_19, %c0_20] : memref<4x8x128xf32, #tpu.memory_space<vmem>>, vector<1x8x128xf32>
    %18 = vector.shape_cast %17 : vector<1x8x128xf32> to vector<8x128xf32>
    %19 = arith.subf %8, %4 : vector<8x128xf32>
    %20 = arith.subf %10, %6 : vector<8x128xf32>
    %cst = arith.constant 5.000000e-01 : f32
    %21 = vector.broadcast %cst : f32 to vector<8x128xf32>
    %22 = arith.mulf %21, %19 : vector<8x128xf32>
    %23 = arith.addf %4, %22 : vector<8x128xf32>
    %cst_21 = arith.constant 5.000000e-01 : f32
    %24 = vector.broadcast %cst_21 : f32 to vector<8x128xf32>
    %25 = arith.mulf %24, %20 : vector<8x128xf32>
    %26 = arith.addf %6, %25 : vector<8x128xf32>
    %27 = arith.subf %16, %12 : vector<8x128xf32>
    %28 = arith.subf %18, %14 : vector<8x128xf32>
    %cst_22 = arith.constant 5.000000e-01 : f32
    %29 = vector.broadcast %cst_22 : f32 to vector<8x128xf32>
    %30 = arith.mulf %29, %27 : vector<8x128xf32>
    %31 = arith.addf %12, %30 : vector<8x128xf32>
    %cst_23 = arith.constant 5.000000e-01 : f32
    %32 = vector.broadcast %cst_23 : f32 to vector<8x128xf32>
    %33 = arith.mulf %32, %28 : vector<8x128xf32>
    %34 = arith.addf %14, %33 : vector<8x128xf32>
    %cst_24 = arith.constant 1.000000e+00 : f32
    %35 = vector.broadcast %cst_24 : f32 to vector<8x128xf32>
    %36 = arith.divf %35, %19 : vector<8x128xf32>
    %cst_25 = arith.constant 1.000000e+00 : f32
    %37 = vector.broadcast %cst_25 : f32 to vector<8x128xf32>
    %38 = arith.divf %37, %20 : vector<8x128xf32>
    %39 = arith.subf %31, %23 : vector<8x128xf32>
    %40 = arith.mulf %39, %36 : vector<8x128xf32>
    %41 = arith.subf %34, %26 : vector<8x128xf32>
    %42 = arith.mulf %41, %38 : vector<8x128xf32>
    %43 = arith.mulf %27, %36 : vector<8x128xf32>
    %44 = math.log %43 : vector<8x128xf32>
    %45 = arith.mulf %28, %38 : vector<8x128xf32>
    %46 = math.log %45 : vector<8x128xf32>
    %c0_26 = arith.constant 0 : index
    %c0_27 = arith.constant 0 : index
    %c0_28 = arith.constant 0 : index
    %47 = vector.load %arg2[%c0_26, %c0_27, %c0_28] : memref<4x8x128xf32, #tpu.memory_space<vmem>>, vector<1x8x128xf32>
    %48 = vector.shape_cast %47 : vector<1x8x128xf32> to vector<8x128xf32>
    %49 = arith.subf %48, %40 : vector<8x128xf32>
    %50 = math.absf %49 : vector<8x128xf32>
    %cst_29 = arith.constant 1.000000e+00 : f32
    %51 = vector.broadcast %cst_29 : f32 to vector<8x128xf32>
    %52 = arith.cmpf olt, %50, %51 : vector<8x128xf32>
    %cst_30 = arith.constant 5.000000e-01 : f32
    %53 = vector.broadcast %cst_30 : f32 to vector<8x128xf32>
    %54 = arith.mulf %53, %50 : vector<8x128xf32>
    %55 = arith.mulf %54, %50 : vector<8x128xf32>
    %cst_31 = arith.constant 5.000000e-01 : f32
    %56 = vector.broadcast %cst_31 : f32 to vector<8x128xf32>
    %57 = arith.subf %50, %56 : vector<8x128xf32>
    %58 = arith.select %52, %55, %57 : vector<8x128xi1>, vector<8x128xf32>
    %c1_32 = arith.constant 1 : index
    %c0_33 = arith.constant 0 : index
    %c0_34 = arith.constant 0 : index
    %59 = vector.load %arg2[%c1_32, %c0_33, %c0_34] : memref<4x8x128xf32, #tpu.memory_space<vmem>>, vector<1x8x128xf32>
    %60 = vector.shape_cast %59 : vector<1x8x128xf32> to vector<8x128xf32>
    %61 = arith.subf %60, %42 : vector<8x128xf32>
    %62 = math.absf %61 : vector<8x128xf32>
    %cst_35 = arith.constant 1.000000e+00 : f32
    %63 = vector.broadcast %cst_35 : f32 to vector<8x128xf32>
    %64 = arith.cmpf olt, %62, %63 : vector<8x128xf32>
    %cst_36 = arith.constant 5.000000e-01 : f32
    %65 = vector.broadcast %cst_36 : f32 to vector<8x128xf32>
    %66 = arith.mulf %65, %62 : vector<8x128xf32>
    %67 = arith.mulf %66, %62 : vector<8x128xf32>
    %cst_37 = arith.constant 5.000000e-01 : f32
    %68 = vector.broadcast %cst_37 : f32 to vector<8x128xf32>
    %69 = arith.subf %62, %68 : vector<8x128xf32>
    %70 = arith.select %64, %67, %69 : vector<8x128xi1>, vector<8x128xf32>
    %c2_38 = arith.constant 2 : index
    %c0_39 = arith.constant 0 : index
    %c0_40 = arith.constant 0 : index
    %71 = vector.load %arg2[%c2_38, %c0_39, %c0_40] : memref<4x8x128xf32, #tpu.memory_space<vmem>>, vector<1x8x128xf32>
    %72 = vector.shape_cast %71 : vector<1x8x128xf32> to vector<8x128xf32>
    %73 = arith.subf %72, %44 : vector<8x128xf32>
    %74 = math.absf %73 : vector<8x128xf32>
    %cst_41 = arith.constant 1.000000e+00 : f32
    %75 = vector.broadcast %cst_41 : f32 to vector<8x128xf32>
    %76 = arith.cmpf olt, %74, %75 : vector<8x128xf32>
    %cst_42 = arith.constant 5.000000e-01 : f32
    %77 = vector.broadcast %cst_42 : f32 to vector<8x128xf32>
    %78 = arith.mulf %77, %74 : vector<8x128xf32>
    %79 = arith.mulf %78, %74 : vector<8x128xf32>
    %cst_43 = arith.constant 5.000000e-01 : f32
    %80 = vector.broadcast %cst_43 : f32 to vector<8x128xf32>
    %81 = arith.subf %74, %80 : vector<8x128xf32>
    %82 = arith.select %76, %79, %81 : vector<8x128xi1>, vector<8x128xf32>
    %c3_44 = arith.constant 3 : index
    %c0_45 = arith.constant 0 : index
    %c0_46 = arith.constant 0 : index
    %83 = vector.load %arg2[%c3_44, %c0_45, %c0_46] : memref<4x8x128xf32, #tpu.memory_space<vmem>>, vector<1x8x128xf32>
    %84 = vector.shape_cast %83 : vector<1x8x128xf32> to vector<8x128xf32>
    %85 = arith.subf %84, %46 : vector<8x128xf32>
    %86 = math.absf %85 : vector<8x128xf32>
    %cst_47 = arith.constant 1.000000e+00 : f32
    %87 = vector.broadcast %cst_47 : f32 to vector<8x128xf32>
    %88 = arith.cmpf olt, %86, %87 : vector<8x128xf32>
    %cst_48 = arith.constant 5.000000e-01 : f32
    %89 = vector.broadcast %cst_48 : f32 to vector<8x128xf32>
    %90 = arith.mulf %89, %86 : vector<8x128xf32>
    %91 = arith.mulf %90, %86 : vector<8x128xf32>
    %cst_49 = arith.constant 5.000000e-01 : f32
    %92 = vector.broadcast %cst_49 : f32 to vector<8x128xf32>
    %93 = arith.subf %86, %92 : vector<8x128xf32>
    %94 = arith.select %88, %91, %93 : vector<8x128xi1>, vector<8x128xf32>
    %95 = arith.addf %58, %70 : vector<8x128xf32>
    %96 = arith.addf %82, %94 : vector<8x128xf32>
    %97 = arith.addf %95, %96 : vector<8x128xf32>
    %98 = tpu.iota {dimensions = array<i32: 0>} : vector<8x128xi32>
    %99 = tpu.iota {dimensions = array<i32: 1>} : vector<8x128xi32>
    %c1_i32 = arith.constant 1 : i32
    %100 = arith.muli %arg0, %c1_i32 : i32
    %101 = arith.addi %100, %arg1 : i32
    %c8_i32 = arith.constant 8 : i32
    %102 = arith.muli %101, %c8_i32 : i32
    %103 = vector.broadcast %102 : i32 to vector<8x128xi32>
    %104 = arith.addi %103, %98 : vector<8x128xi32>
    %c128_i32 = arith.constant 128 : i32
    %105 = vector.broadcast %c128_i32 : i32 to vector<8x128xi32>
    %106 = arith.muli %104, %105 : vector<8x128xi32>
    %107 = arith.addi %106, %99 : vector<8x128xi32>
    %c50_i32 = arith.constant 50 : i32
    %108 = vector.broadcast %c50_i32 : i32 to vector<8x128xi32>
    %109 = arith.cmpi slt, %107, %108 : vector<8x128xi32>
    %cst_50 = arith.constant 0.000000e+00 : f32
    %110 = vector.broadcast %cst_50 : f32 to vector<8x128xf32>
    %111 = arith.select %109, %97, %110 : vector<8x128xi1>, vector<8x128xf32>
    %c0_51 = arith.constant 0 : index
    %c0_52 = arith.constant 0 : index
    %112 = vector.load %arg6[%c0_51, %c0_52] : memref<8x128xf32, #tpu.memory_space<vmem>>, vector<8x128xf32>
    %113 = arith.addf %112, %111 : vector<8x128xf32>
    %c0_53 = arith.constant 0 : index
    %c0_54 = arith.constant 0 : index
    %114 = vector.load %arg6[%c0_53, %c0_54] : memref<8x128xf32, #tpu.memory_space<vmem>>, vector<8x128xf32>
    tpu.vector_store %arg6[%c0_53, %c0_54], %113 {strides = array<i32>} : memref<8x128xf32, #tpu.memory_space<vmem>>, vector<8x128xf32>,
    %c0_i32_55 = arith.constant 0 : i32
    %115 = arith.cmpi eq, %arg1, %c0_i32_55 : i32
    %116 = arith.extui %115 : i1 to i32
    %c0_i32_56 = arith.constant 0 : i32
    %117 = arith.cmpi ne, %116, %c0_i32_56 : i32
    scf.if %117 {
      %c0_57 = arith.constant 0 : index
      %c0_58 = arith.constant 0 : index
      %118 = vector.load %arg6[%c0_57, %c0_58] : memref<8x128xf32, #tpu.memory_space<vmem>>, vector<8x128xf32>
      %119 = vector.shape_cast %118 : vector<8x128xf32> to vector<1x8x128xf32>
      %cst_59 = arith.constant dense<0.000000e+00> : vector<1xf32>
      %120 = vector.multi_reduction <add>, %119, %cst_59 [1, 2] : vector<1x8x128xf32> to vector<1xf32>
      %121 = vector.shape_cast %120 : vector<1xf32> to vector<1x1x1xf32>
      %122 = vector.extract %121[0, 0, 0] : f32 from vector<1x1x1xf32>
      %c0_60 = arith.constant 0 : index
      %c0_61 = arith.constant 0 : index
      %123 = memref.load %arg5[%c0_60, %c0_61] : memref<1x1xf32, #tpu.memory_space<smem>>
      memref.store %122, %arg5[%c0_60, %c0_61] : memref<1x1xf32, #tpu.memory_space<smem>>
    } else {
    }
    return
  }
  func.func @transform_0(%arg0: i32, %arg1: i32) -> (i32, i32, i32) {
    %c1_i32 = arith.constant 1 : i32
    %0 = arith.muli %arg0, %c1_i32 : i32
    %1 = arith.addi %0, %arg1 : i32
    %c0_i32 = arith.constant 0 : i32
    %c0_i32_0 = arith.constant 0 : i32
    %c0_i32_1 = arith.constant 0 : i32
    return %c0_i32, %1, %c0_i32_0 : i32, i32, i32
  }
  func.func @transform_1(%arg0: i32, %arg1: i32) -> (i32, i32, i32) {
    %c1_i32 = arith.constant 1 : i32
    %0 = arith.muli %arg0, %c1_i32 : i32
    %1 = arith.addi %0, %arg1 : i32
    %c0_i32 = arith.constant 0 : i32
    %c0_i32_0 = arith.constant 0 : i32
    %c0_i32_1 = arith.constant 0 : i32
    return %c0_i32, %1, %c0_i32_0 : i32, i32, i32
  }
  func.func @transform_2(%arg0: i32, %arg1: i32) -> (i32, i32, i32) {
    %c1_i32 = arith.constant 1 : i32
    %0 = arith.muli %arg0, %c1_i32 : i32
    %1 = arith.addi %0, %arg1 : i32
    %c0_i32 = arith.constant 0 : i32
    %c0_i32_0 = arith.constant 0 : i32
    %c0_i32_1 = arith.constant 0 : i32
    return %c0_i32, %1, %c0_i32_0 : i32, i32, i32
  }
  func.func @transform_3(%arg0: i32, %arg1: i32) -> (i32, i32) {
    %c0_i32 = arith.constant 0 : i32
    %c0_i32_0 = arith.constant 0 : i32
    return %arg0, %c0_i32 : i32, i32
  }
}

</mosaic_0001>

<llo_original>
// kernel: tpu_custom_call.1
$region0: #{tpu_custom_call.1}
  #allocation0 [shape = 'u32[]', space=smem, size = 0x4, offset = 0x4, fixed_abs, tag = 'smem constant byte address 0x4 - core index']
  #allocation1 [shape = 'u32[144,128]{1,0:T(1,128)}', space=vmem, size = 0x12000, scoped, tag = 'internal scratch']
  #allocation2 [shape = 'f32[8,128]{1,0:T(8,128)}', space=vmem, size = 0x1000, scoped, tag = 'scratch operand']
  %s0 = inlined_call_operand.hbm [shape: f32[4,8,128], index: 0, kind: input, shape index: {}]
  %s1 = inlined_call_operand.hbm [shape: f32[4,8,128], index: 1, kind: input, shape index: {}]
  %s2 = inlined_call_operand.hbm [shape: f32[4,8,128], index: 2, kind: input, shape index: {}]
  %s3 = inlined_call_operand.hbm [shape: f32[1,1], index: 3, kind: output, shape index: {}]
  %s4 = sld [smem:[#allocation0]]
  $region42: #{tpu_custom_call.1} parent=0
    _
  %s6 = ssub.s32 1, %s4
  %s7 = scalar_select 0, %s6, %s4
  $region1: #{tpu_custom_call.1} parent=0
    #allocation3 [shape = 'u8[16384]{0}', space=vmem, size = 0x4000, scoped, tag = 'input window, operand 0, single buffered']
    #allocation4 [shape = 's32[1]{0}', space=sflag, size = 0x4, scoped, tag = 'scoped memory for tpu_custom_call.1']
    #allocation5 [shape = 's32[1]{0}', space=sflag, size = 0x4, scoped, tag = 'scoped memory for tpu_custom_call.1']
    #allocation6 [shape = 'u8[16384]{0}', space=vmem, size = 0x4000, scoped, tag = 'input window, operand 1, single buffered']
    #allocation7 [shape = 's32[1]{0}', space=sflag, size = 0x4, scoped, tag = 'scoped memory for tpu_custom_call.1']
    #allocation8 [shape = 'u8[16384]{0}', space=vmem, size = 0x4000, scoped, tag = 'input window, operand 2, single buffered']
    #allocation9 [shape = 'u8[512]{0}', space=smem, size = 0x200, scoped, tag = 'output window, operand 0, single buffered']
    %8 = vsyncpa [#allocation4], 0
    %9 = vsyncpa [#allocation7], 0
    %10 = vsyncpa [#allocation5], 0
    // Predicated region
    $region2: #{tpu_custom_call.1} parent=1 // pred_check
      _
    $region3: #{tpu_custom_call.1} parent=1 // pred_check_branch
      %12 = sbr.rel (0) target = $region5
    $region4: #{tpu_custom_call.1} parent=1 // pred_region
      %s13 = sadd.s32 0, 0
      %s15 = ssub.s32 512, 512
      %16 = vsyncadd [#allocation4], %s15
      %s17 = smul.addr %s13, 128
      %s18 = scalar_lea.hbm %s0, %s17
      %s19 = sshll.u32 [#allocation3], 4
      %s20 = int_to_ptr.vmem [resolvable:$true] %s19
      %25 = dma.hbm_to_vmem [thread:$0]  %s18, 512, %s20, [#allocation4], 128, 128, 8
    $region5: #{tpu_custom_call.1} parent=1 // pred_fallthru
      _
    // Predicated region
    $region6: #{tpu_custom_call.1} parent=1 // pred_check
      _
    $region7: #{tpu_custom_call.1} parent=1 // pred_check_branch
      %27 = sbr.rel (0) target = $region9
    $region8: #{tpu_custom_call.1} parent=1 // pred_region
      %s28 = sadd.s32 0, 0
      %s30 = ssub.s32 512, 512
      %31 = vsyncadd [#allocation7], %s30
      %s32 = smul.addr %s28, 128
      %s33 = scalar_lea.hbm %s1, %s32
      %s34 = sshll.u32 [#allocation6], 4
      %s35 = int_to_ptr.vmem [resolvable:$true] %s34
      %40 = dma.hbm_to_vmem [thread:$0]  %s33, 512, %s35, [#allocation7], 128, 128, 8
    $region9: #{tpu_custom_call.1} parent=1 // pred_fallthru
      _
    // Predicated region
    $region10: #{tpu_custom_call.1} parent=1 // pred_check
      _
    $region11: #{tpu_custom_call.1} parent=1 // pred_check_branch
      %42 = sbr.rel (0) target = $region13
    $region12: #{tpu_custom_call.1} parent=1 // pred_region
      %s43 = sadd.s32 0, 0
      %s45 = ssub.s32 512, 512
      %46 = vsyncadd [#allocation7], %s45
      %s47 = smul.addr %s43, 128
      %s48 = scalar_lea.hbm %s2, %s47
      %s49 = sshll.u32 [#allocation8], 4
      %s50 = int_to_ptr.vmem [resolvable:$true] %s49
      %55 = dma.hbm_to_vmem [thread:$0]  %s48, 512, %s50, [#allocation7], 128, 128, 8
    $region13: #{tpu_custom_call.1} parent=1 // pred_fallthru
      _
    // Predicated region
    $region14: #{tpu_custom_call.1} parent=1 // pred_check
      _
    $region15: #{tpu_custom_call.1} parent=1 // pred_check_branch
      %57 = sbr.rel (0) target = $region17
    $region16: #{tpu_custom_call.1} parent=1 // pred_region
      %58 = dma.done [#allocation4], 512
    $region17: #{tpu_custom_call.1} parent=1 // pred_fallthru
      _
    // Predicated region
    $region18: #{tpu_custom_call.1} parent=1 // pred_check
      _
    $region19: #{tpu_custom_call.1} parent=1 // pred_check_branch
      %60 = sbr.rel (0) target = $region21
    $region20: #{tpu_custom_call.1} parent=1 // pred_region
      %61 = dma.done [#allocation7], 512
    $region21: #{tpu_custom_call.1} parent=1 // pred_fallthru
      _
    // Predicated region
    $region22: #{tpu_custom_call.1} parent=1 // pred_check
      _
    $region23: #{tpu_custom_call.1} parent=1 // pred_check_branch
      %63 = sbr.rel (0) target = $region25
    $region24: #{tpu_custom_call.1} parent=1 // pred_region
      %64 = dma.done [#allocation7], 512
    $region25: #{tpu_custom_call.1} parent=1 // pred_fallthru
      _
    %s65 = sadd.s32 0, 0
    %s66 = sadd.s32 0, 0
    %s67 = sadd.s32 0, 0
    %p68 = scmp.eq.s32.totalorder 0, 0
    // Predicated region
    $region26: #{tpu_custom_call.1} parent=1 // pred_check
      %p69 = pneg %p68
    $region27: #{tpu_custom_call.1} parent=1 // pred_check_branch
      %71 = sbr.rel (%p69) target = $region29
    $region28: #{tpu_custom_call.1} parent=1 // pred_region
      %72 = vst [vmem:[#allocation2] sm:$0xff] 0.0
    $region29: #{tpu_custom_call.1} parent=1 // pred_fallthru
      _
    %v73 = vld [vmem:[#allocation8] sm:$0xff]
    %s74 = scalar_lea.vmem [#allocation8], 8
    %v75 = vld [vmem:[%s74] sm:$0xff]
    %s76 = scalar_lea.vmem [#allocation8], 16
    %v77 = vld [vmem:[%s76] sm:$0xff]
    %s78 = scalar_lea.vmem [#allocation8], 24
    %v79 = vld [vmem:[%s78] sm:$0xff]
    %v80 = vld [vmem:[#allocation6] sm:$0xff]
    %s81 = scalar_lea.vmem [#allocation6], 8
    %v82 = vld [vmem:[%s81] sm:$0xff]
    %s83 = scalar_lea.vmem [#allocation6], 16
    %v84 = vld [vmem:[%s83] sm:$0xff]
    %s85 = scalar_lea.vmem [#allocation6], 24
    %v86 = vld [vmem:[%s85] sm:$0xff]
    %v87 = vsub.f32 %v77, %v73
    %v88 = vsub.f32 %v79, %v75
    %v89 = vmul.f32 %v87, 0.5
    %v90 = vadd.f32 %v73, %v89
    %v91 = vmul.f32 %v88, 0.5
    %v92 = vadd.f32 %v75, %v91
    %v93 = vsub.f32 %v84, %v80
    %v94 = vsub.f32 %v86, %v82
    %v95 = vmul.f32 %v93, 0.5
    %v96 = vadd.f32 %v80, %v95
    %v97 = vmul.f32 %v94, 0.5
    %v98 = vadd.f32 %v82, %v97
    %v99 = vrcp.pop %v87
    %v100 = vmul.f32 1.0, %v99
    %v101 = vrcp.pop %v88
    %v102 = vmul.f32 1.0, %v101
    %v103 = vsub.f32 %v96, %v90
    %v104 = vmul.f32 %v103, %v100
    %v105 = vsub.f32 %v98, %v92
    %v106 = vmul.f32 %v105, %v102
    %v107 = vmul.f32 %v93, %v100
    %v108 = vlog2.pop %v107
    %v109 = vmul.f32 %v108, 0.6931472
    %v110 = vmul.f32 %v94, %v102
    %v111 = vlog2.pop %v110
    %v112 = vmul.f32 %v111, 0.6931472
    %v113 = vld [vmem:[#allocation3] sm:$0xff]
    %v114 = vsub.f32 %v113, %v104
    %v115 = vand.u32 2147483647, %v114
    %vm116 = vcmp.lt.f32.partialorder %v115, 1.0
    %v117 = vmul.f32 %v115, 0.5
    %v118 = vmul.f32 %v117, %v115
    %v119 = vsub.f32 %v115, 0.5
    %v120 = vsel %vm116, %v118, %v119
    %s121 = scalar_lea.vmem [#allocation3], 8
    %v122 = vld [vmem:[%s121] sm:$0xff]
    %v123 = vsub.f32 %v122, %v106
    %v124 = vand.u32 2147483647, %v123
    %vm125 = vcmp.lt.f32.partialorder %v124, 1.0
    %v126 = vmul.f32 %v124, 0.5
    %v127 = vmul.f32 %v126, %v124
    %v128 = vsub.f32 %v124, 0.5
    %v129 = vsel %vm125, %v127, %v128
    %s130 = scalar_lea.vmem [#allocation3], 16
    %v131 = vld [vmem:[%s130] sm:$0xff]
    %v132 = vsub.f32 %v131, %v109
    %v133 = vand.u32 2147483647, %v132
    %vm134 = vcmp.lt.f32.partialorder %v133, 1.0
    %v135 = vmul.f32 %v133, 0.5
    %v136 = vmul.f32 %v135, %v133
    %v137 = vsub.f32 %v133, 0.5
    %v138 = vsel %vm134, %v136, %v137
    %s139 = scalar_lea.vmem [#allocation3], 24
    %v140 = vld [vmem:[%s139] sm:$0xff]
    %v141 = vsub.f32 %v140, %v112
    %v142 = vand.u32 2147483647, %v141
    %vm143 = vcmp.lt.f32.partialorder %v142, 1.0
    %v144 = vmul.f32 %v142, 0.5
    %v145 = vmul.f32 %v144, %v142
    %v146 = vsub.f32 %v142, 0.5
    %v147 = vsel %vm143, %v145, %v146
    %v148 = vadd.f32 %v120, %v129
    %v149 = vadd.f32 %v138, %v147
    %v150 = vadd.f32 %v148, %v149
    %v151 = vlaneseq
    %v152 = vshrl.u32 %v151, 7
    %v153 = vlaneseq
    %v154 = vand.u32 %v153, 127
    %s155 = sadd.s32 0, 0
    %s156 = smul.u32 %s155, 8
    %v157 = vstv %s156
    %v158 = vadd.s32 %v157, %v152
    %v159 = vmul.u32 %v158, 128
    %v160 = vadd.s32 %v159, %v154
    %vm161 = vcmp.lt.s32.totalorder %v160, 50
    %v162 = vsel %vm161, %v150, 0.0
    %v163 = vld [vmem:[#allocation2] sm:$0xff]
    %v164 = vadd.f32 %v163, %v162
    %165 = vst [vmem:[#allocation2] sm:$0xff] %v164
    // Predicated region
    $region30: #{tpu_custom_call.1} parent=1 // pred_check
      %p166 = pneg %p68
    $region31: #{tpu_custom_call.1} parent=1 // pred_check_branch
      %168 = sbr.rel (%p166) target = $region33
    $region32: #{tpu_custom_call.1} parent=1 // pred_region
      %v169 = vld [vmem:[#allocation2] sm:$0xff]
      %170 = vadd.xlane.f32.xlu0 %v169
      %v171 = vpop.xlane.xlu0 %170
      %v172 = vrot.slane %v171, 4
      %v173 = vadd.f32 %v171, %v172
      %v174 = vrot.slane %v173, 2
      %v175 = vadd.f32 %v173, %v174
      %v176 = vrot.slane %v175, 1
      %v177 = vadd.f32 %v175, %v176
      %s178 = vtos %v177
      %s179 = scalar_lea.smem [#allocation9], 0
      %180 = sst [smem:[%s179]] %s178
    $region33: #{tpu_custom_call.1} parent=1 // pred_fallthru
      _
    // Predicated region
    $region34: #{tpu_custom_call.1} parent=1 // pred_check
      _
    $region35: #{tpu_custom_call.1} parent=1 // pred_check_branch
      %182 = sbr.rel (0) target = $region37
    $region36: #{tpu_custom_call.1} parent=1 // pred_region
      %s184 = ssub.s32 16, 16
      %185 = vsyncadd [#allocation5], %s184
      %188 = dma.smem_to_hbm [#allocation9], 16, %s3, [#allocation5]
    $region37: #{tpu_custom_call.1} parent=1 // pred_fallthru
      _
    // Predicated region
    $region38: #{tpu_custom_call.1} parent=1 // pred_check
      _
    $region39: #{tpu_custom_call.1} parent=1 // pred_check_branch
      %190 = sbr.rel (0) target = $region41
    $region40: #{tpu_custom_call.1} parent=1 // pred_region
      %191 = dma.done [#allocation5], 16
    $region41: #{tpu_custom_call.1} parent=1 // pred_fallthru
      _
    %192 = sfence
    %193 = vsyncpa [#allocation4], 1
    %194 = vsyncpa [#allocation7], 1
    %195 = vsyncpa [#allocation5], 1

</llo_original>
